<compile_context>
chip_gen: v7x
topology: tpu7x:2x2x1
jax: 0.10.0
libtpu: 0.0.40
codegen_flags: <defaults>
</compile_context>

<pallas_src>
import functools

import jax
import jax.numpy as jnp
import numpy as np
from jax import lax
from jax.experimental import pallas as pl
from jax.experimental.pallas import tpu as pltpu


# ---------------------------------------------------------------------------
# VMEM budgeting (generation-aware: v7x has 64 MiB physical, v5e/v6e 128 MiB)
# ---------------------------------------------------------------------------
def _vmem_limit_bytes():
    try:
        cap = int(getattr(pltpu.get_tpu_info(), "vmem_capacity_bytes", 0)) or (64 << 20)
    except Exception:
        cap = 64 << 20                       # conservative (v7x-sized) fallback
    return int(min(cap * 3 // 4, 112 << 20))


def _choose_tile(hw_out, C, H, W, vmem_budget_bytes, max_tile=2048):
    """Pick an output-pixel tile (lane count) so the resident image block, the
    interpolation-weight tiles and the VPU temporaries fit the VMEM budget.
    Returns (tile, padded_hw_out)."""
    per_lane = 4 * (3 * W + 3 * H + 2 * C * H + 2 * C + 16)   # f32 bytes per output lane
    fixed = 4 * C * H * W * 2                                  # double-buffered image block
    avail = max(vmem_budget_bytes - fixed, 128 * per_lane)
    cap = int(min(max_tile, avail // per_lane))
    cap = max(128, (cap // 128) * 128)
    if hw_out <= cap:
        return hw_out, hw_out                 # full-extent block: always legal
    for t in range(cap, 127, -128):           # prefer a divisor -> no output padding
        if hw_out % t == 0:
            return t, hw_out
    t = cap                                   # fall back to padding the output axis
    return t, ((hw_out + t - 1) // t) * t


# ---------------------------------------------------------------------------
# Pallas kernel: fused bilinear/border warp + nearest/zeros overlap mask
# ---------------------------------------------------------------------------
def _warp_mask_kernel(img_ref, coords_ref, warp_ref, mask_ref, *,
                      C, H_img, W_img, H_one, W_one):
    # img_ref:    [1, C*H_img, W_img]  source image (sublanes = (c, y), lanes = x)
    # coords_ref: [1, 2, T]            pixel-space coords at the flow resolution
    #                                  (row 0 = x, row 1 = y), float32
    # warp_ref:   [1, C, T]            bilinear / border warp of the source image
    # mask_ref:   [1, 1, T]            nearest / zeros sample of an all-ones tensor
    cx = coords_ref[0, 0:1, :]                   # [1, T] f32
    cy = coords_ref[0, 1:2, :]                   # [1, T] f32
    T = cx.shape[-1]

    # ----- overlap mask: nearest / zeros on all-ones at (H_one, W_one). -----
    # Source is all-ones, so the gather reduces to an in-bounds indicator of the
    # rounded coordinate (pure VPU, no data movement).
    rx = jnp.round(cx)
    ry = jnp.round(cy)
    inb = ((rx >= 0.0) & (rx <= W_one - 1.0) &
           (ry >= 0.0) & (ry <= H_one - 1.0))
    mask_ref[0] = inb.astype(mask_ref.dtype)

    # ----- bilinear / border / align_corners=True warp of the RGB image. -----
    # coords are pixel coords on the (H_one, W_one) grid; rescale to source
    # pixels with a compile-time constant (folds the module's normalize /
    # unnormalize round trip).
    sx = (W_img - 1.0) / max(W_one - 1, 1)
    sy = (H_img - 1.0) / max(H_one - 1, 1)
    px = jnp.clip(cx * sx, 0.0, W_img - 1.0)     # border padding clips coords
    py = jnp.clip(cy * sy, 0.0, H_img - 1.0)
    x0 = jnp.floor(px)
    y0 = jnp.floor(py)
    wx = px - x0                                 # [1, T] f32
    wy = py - y0
    x0i = x0.astype(jnp.int32)                   # int32 indices (exactness-safe)
    y0i = y0.astype(jnp.int32)
    x1i = jnp.minimum(x0i + 1, W_img - 1)
    y1i = jnp.minimum(y0i + 1, H_img - 1)

    # Separable interpolation weights (one-hot scatter built on the VPU).
    col = lax.broadcasted_iota(jnp.int32, (W_img, T), 0)
    Cx = (jnp.where(col == x0i, 1.0 - wx, 0.0) +
          jnp.where(col == x1i, wx, 0.0))        # [W_img, T] f32

    row = lax.broadcasted_iota(jnp.int32, (H_img, T), 0)
    Ry = (jnp.where(row == y0i, 1.0 - wy, 0.0) +
          jnp.where(row == y1i, wy, 0.0))        # [H_img, T] f32

    # Stage 1 (MXU): interpolate along x for every (c, y) row at once.
    img2d = img_ref[0].astype(jnp.float32)       # [C*H_img, W_img]
    t_x = jnp.dot(img2d, Cx, preferred_element_type=jnp.float32)   # [C*H_img, T]

    # Stage 2 (VPU): blend along y and reduce, per channel (C is tiny: RGB).
    outs = []
    for c in range(C):
        tc = t_x[c * H_img:(c + 1) * H_img, :]   # [H_img, T] static, sublane-aligned
        outs.append(jnp.sum(tc * Ry, axis=0, keepdims=True))
    warp_ref[0] = jnp.concatenate(outs, axis=0).astype(warp_ref.dtype)


def pallas_grid_sample(img, coords_px, ones_hw=None, *, max_tile=2048):
    """Warp `img` [B,C,H,W] with pixel-space coords `coords_px` [B,2,Ho,Wo]
    (given at the flow/depth resolution, align_corners=True convention).
    Also returns the nearest/zeros overlap mask of an all-ones [B,1,Ho,Wo]."""
    B, C, H, W = img.shape
    _, _, Ho, Wo = coords_px.shape
    Hs, Ws = (Ho, Wo) if ones_hw is None else ones_hw
    HWo = Ho * Wo

    # Pure metadata reshapes in HBM -- no host-side channel padding or copies.
    img2d = img.reshape(B, C * H, W)
    crd = coords_px.astype(jnp.float32).reshape(B, 2, HWo)   # coord math stays f32

    vmem_limit = _vmem_limit_bytes()
    tile, HWo_pad = _choose_tile(HWo, C, H, W, vmem_limit // 2, max_tile=max_tile)
    if HWo_pad != HWo:
        crd = jnp.pad(crd, ((0, 0), (0, 0), (0, HWo_pad - HWo)))
    n_tiles = HWo_pad // tile

    # TODO(synk): for extremely large source images (C*H*W*4B ~ VMEM) add a
    # third "arbitrary" reduction grid axis over W with a VMEM accumulator.
    kernel = functools.partial(_warp_mask_kernel, C=C, H_img=H, W_img=W,
                               H_one=Hs, W_one=Ws)

    warp_f, mask_f = pl.pallas_call(
        kernel,
        out_shape=(jax.ShapeDtypeStruct((B, C, HWo_pad), img.dtype),
                   jax.ShapeDtypeStruct((B, 1, HWo_pad), jnp.float32)),
        grid=(B, n_tiles),
        in_specs=[
            # full source image; constant block index across tiles -> stays resident
            pl.BlockSpec((1, C * H, W), lambda b, t: (b, 0, 0)),
            # lane-dense tile of output-pixel coordinates
            pl.BlockSpec((1, 2, tile), lambda b, t: (b, 0, t)),
        ],
        out_specs=(
            pl.BlockSpec((1, C, tile), lambda b, t: (b, 0, t)),
            pl.BlockSpec((1, 1, tile), lambda b, t: (b, 0, t)),
        ),
        compiler_params=pltpu.CompilerParams(
            dimension_semantics=("parallel", "parallel"),  # megacore on v7x
            vmem_limit_bytes=vmem_limit,
        ),
    )(img2d, crd)

    if HWo_pad != HWo:
        warp_f = warp_f[..., :HWo]
        mask_f = mask_f[..., :HWo]
    return warp_f.reshape(B, C, Ho, Wo), mask_f.reshape(B, 1, Ho, Wo)


# ---------------------------------------------------------------------------
# Glue: coords_from_optical_flow + ViewSynthesis.forward (optical-flow path)
# ---------------------------------------------------------------------------
def coords_from_optical_flow(flow):
    """flow [B,2,H,W] -> PIXEL-space sampling coords [B,2,H,W] at the flow
    resolution (channel 0 = x, channel 1 = y).  The module's normalize /
    unnormalize round trip is folded into the kernel's compile-time rescale,
    which is algebraically identical."""
    b, _, h, w = flow.shape
    ys, xs = jnp.meshgrid(jnp.arange(h, dtype=jnp.float32),
                          jnp.arange(w, dtype=jnp.float32), indexing='ij')
    grid = jnp.stack([xs, ys], axis=0)[None]                 # [1,2,H,W]
    return grid + flow.astype(jnp.float32)


def view_synthesis_forward(tgt, ctxs, rgb, depths=None, scene_flows=None,
                           world_scene_flows=None, cams=None, optical_flow=None,
                           return_masks=False):
    """JAX/Pallas equivalent of ViewSynthesis.forward (optical-flow warping path)."""
    # TODO(synk): depth+camera path (coords_from_motion / Camera class and the
    # bilinear interpolate() of depths when upsample_depth=True) needs the
    # external Camera class; only the optical-flow path is implemented here.
    ctxs = [k for k in rgb.keys() if k != tgt] if ctxs is None else ctxs
    if optical_flow is None:
        raise ValueError('Invalid inputs for view synthesis (optical_flow required here)')

    flows_any = list(optical_flow.values())[0] if isinstance(optical_flow, dict) else optical_flow
    num_scales = len(flows_any)

    warps = {ctx: [] for ctx in ctxs}
    masks = {ctx: [] for ctx in ctxs}
    for scale in range(num_scales):
        for ctx in ctxs:
            flow = optical_flow[ctx][scale]
            coords_px = coords_from_optical_flow(flow)        # [B,2,Hs,Ws] pixel space
            warp, mask = pallas_grid_sample(rgb[ctx], coords_px)
            warps[ctx].append(warp)
            if return_masks:
                masks[ctx].append(mask)
    return {'warps': warps, 'masks': masks if return_masks else None}


# ---------------------------------------------------------------------------
# Pure-JAX reference (faithful to PyTorch grid_sample semantics), for checks
# ---------------------------------------------------------------------------
def _normalize_coords(coords_px):
    b, _, h, w = coords_px.shape
    xn = 2.0 * coords_px[:, 0] / (w - 1) - 1.0
    yn = 2.0 * coords_px[:, 1] / (h - 1) - 1.0
    return jnp.stack([xn, yn], axis=1)


def _ref_bilinear_border(img, coords):
    B, C, H, W = img.shape
    px = jnp.clip((coords[:, 0] + 1.0) * 0.5 * (W - 1), 0.0, W - 1.0)
    py = jnp.clip((coords[:, 1] + 1.0) * 0.5 * (H - 1), 0.0, H - 1.0)
    x0 = jnp.floor(px).astype(jnp.int32); y0 = jnp.floor(py).astype(jnp.int32)
    x1 = jnp.minimum(x0 + 1, W - 1);      y1 = jnp.minimum(y0 + 1, H - 1)
    wx = px - x0; wy = py - y0

    def gather(yy, xx):
        flat = img.reshape(B, C, H * W)
        idx = (yy * W + xx).reshape(B, 1, -1)
        g = jnp.take_along_axis(flat, jnp.broadcast_to(idx, (B, C, idx.shape[-1])), axis=2)
        return g.reshape(B, C, *yy.shape[1:])

    v00, v01 = gather(y0, x0), gather(y0, x1)
    v10, v11 = gather(y1, x0), gather(y1, x1)
    wx, wy = wx[:, None], wy[:, None]
    return v00 * (1 - wx) * (1 - wy) + v01 * wx * (1 - wy) + v10 * (1 - wx) * wy + v11 * wx * wy


def _ref_mask_nearest_zeros(coords, hw):
    H, W = hw
    px = (coords[:, 0] + 1.0) * 0.5 * (W - 1)
    py = (coords[:, 1] + 1.0) * 0.5 * (H - 1)
    rx, ry = jnp.round(px), jnp.round(py)
    inb = (rx >= 0) & (rx <= W - 1) & (ry >= 0) & (ry <= H - 1)
    return inb[:, None].astype(jnp.float32)


# ---------------------------------------------------------------------------
if __name__ == "__main__":
    key = jax.random.PRNGKey(0)
    k1, k2, k3, k4 = jax.random.split(key, 4)

    B, C, H, W = 2, 3, 16, 16
    tgt, ctxs = 0, [1]

    rgb = {0: jax.random.uniform(k1, (B, C, H, W), jnp.float32),
           1: jax.random.uniform(k2, (B, C, H, W), jnp.float32)}
    # two scales of optical flow for the context view
    optical_flow = {1: [3.0 * jax.random.normal(k3, (B, 2, H, W), jnp.float32),
                        1.5 * jax.random.normal(k4, (B, 2, H // 2, W // 2), jnp.float32)]}

    out = view_synthesis_forward(tgt, ctxs, rgb, optical_flow=optical_flow,
                                 return_masks=True)

    # block on all results
    for ctx in ctxs:
        for w_ in out['warps'][ctx]:
            jax.block_until_ready(w_)
        for m_ in out['masks'][ctx]:
            jax.block_until_ready(m_)

    # sanity check vs pure-JAX reference at both scales.
    # Warp tolerance is sized for the default (single bf16-pass) MXU precision.
    for scale in range(2):
        flow = optical_flow[1][scale]
        hs, ws = flow.shape[-2:]
        cpx = coords_from_optical_flow(flow)
        cnorm = _normalize_coords(cpx)
        ref_warp = _ref_bilinear_border(rgb[1], cnorm)
        ref_mask = _ref_mask_nearest_zeros(cnorm, (hs, ws))

        np.testing.assert_allclose(np.asarray(out['warps'][1][scale]),
                                   np.asarray(ref_warp), rtol=2e-2, atol=2e-2)

        got_m = np.asarray(out['masks'][1][scale])
        want_m = np.asarray(ref_mask)
        # exclude coords within 1e-3 px of the nearest-neighbor in/out boundary,
        # where fp rounding-order may legitimately differ between formulations
        cx = np.asarray(cpx[:, 0]); cy = np.asarray(cpx[:, 1])
        amb = ((np.abs(cx + 0.5) < 1e-3) | (np.abs(cx - (ws - 0.5)) < 1e-3) |
               (np.abs(cy + 0.5) < 1e-3) | (np.abs(cy - (hs - 0.5)) < 1e-3))[:, None]
        assert np.all((got_m == want_m) | amb), "mask mismatch"

    print("KERNEL_OK")
</pallas_src>

<mosaic_0001>
module attributes {stable_mosaic.version = 11 : i64} {
  func.func @_warp_mask_kernel(%arg0: i32, %arg1: i32, %arg2: memref<1x48x16xf32, #tpu.memory_space<vmem>>, %arg3: memref<1x2x256xf32, #tpu.memory_space<vmem>>, %arg4: memref<1x3x256xf32, #tpu.memory_space<vmem>>, %arg5: memref<1x1x256xf32, #tpu.memory_space<vmem>>) attributes {dimension_semantics = [#tpu.dimension_semantics<parallel>, #tpu.dimension_semantics<parallel>], iteration_bounds = array<i64: 2, 1>, scalar_prefetch = 0 : i64, scratch_operands = 0 : i64, tpu.core_type = #tpu.core_type<tc>, window_params = [{transform_indices = @transform_0, window_bounds = array<i64: 1, 48, 16>}, {transform_indices = @transform_1, window_bounds = array<i64: 1, 2, 256>}, {transform_indices = @transform_2, window_bounds = array<i64: 1, 3, 256>}, {transform_indices = @transform_3, window_bounds = array<i64: 1, 1, 256>}]} {
    %c0 = arith.constant 0 : index
    %c0_0 = arith.constant 0 : index
    %c0_1 = arith.constant 0 : index
    %0 = vector.load %arg3[%c0, %c0_0, %c0_1] : memref<1x2x256xf32, #tpu.memory_space<vmem>>, vector<1x1x256xf32>
    %1 = vector.shape_cast %0 : vector<1x1x256xf32> to vector<1x256xf32>
    %c0_2 = arith.constant 0 : index
    %c1 = arith.constant 1 : index
    %c0_3 = arith.constant 0 : index
    %2 = vector.load %arg3[%c0_2, %c1, %c0_3] : memref<1x2x256xf32, #tpu.memory_space<vmem>>, vector<1x1x256xf32>
    %3 = vector.shape_cast %2 : vector<1x1x256xf32> to vector<1x256xf32>
    %4 = math.roundeven %1 : vector<1x256xf32>
    %5 = math.roundeven %3 : vector<1x256xf32>
    %cst = arith.constant 0.000000e+00 : f32
    %6 = vector.broadcast %cst : f32 to vector<1x256xf32>
    %7 = arith.cmpf oge, %4, %6 : vector<1x256xf32>
    %cst_4 = arith.constant 1.500000e+01 : f32
    %8 = vector.broadcast %cst_4 : f32 to vector<1x256xf32>
    %9 = arith.cmpf ole, %4, %8 : vector<1x256xf32>
    %10 = arith.andi %7, %9 : vector<1x256xi1>
    %cst_5 = arith.constant 0.000000e+00 : f32
    %11 = vector.broadcast %cst_5 : f32 to vector<1x256xf32>
    %12 = arith.cmpf oge, %5, %11 : vector<1x256xf32>
    %13 = arith.andi %10, %12 : vector<1x256xi1>
    %cst_6 = arith.constant 1.500000e+01 : f32
    %14 = vector.broadcast %cst_6 : f32 to vector<1x256xf32>
    %15 = arith.cmpf ole, %5, %14 : vector<1x256xf32>
    %16 = arith.andi %13, %15 : vector<1x256xi1>
    %17 = arith.extui %16 : vector<1x256xi1> to vector<1x256xi32>
    %18 = arith.sitofp %17 : vector<1x256xi32> to vector<1x256xf32>
    %c0_7 = arith.constant 0 : index
    %c0_8 = arith.constant 0 : index
    %c0_9 = arith.constant 0 : index
    %19 = vector.load %arg5[%c0_7, %c0_8, %c0_9] : memref<1x1x256xf32, #tpu.memory_space<vmem>>, vector<1x1x256xf32>
    %20 = vector.shape_cast %19 : vector<1x1x256xf32> to vector<1x256xf32>
    %21 = vector.shape_cast %18 : vector<1x256xf32> to vector<1x1x256xf32>
    tpu.vector_store %arg5[%c0_7, %c0_8, %c0_9], %21 {strides = array<i32>} : memref<1x1x256xf32, #tpu.memory_space<vmem>>, vector<1x1x256xf32>,
    %cst_10 = arith.constant 1.000000e+00 : f32
    %22 = vector.broadcast %cst_10 : f32 to vector<1x256xf32>
    %23 = arith.mulf %1, %22 : vector<1x256xf32>
    %cst_11 = arith.constant 0.000000e+00 : f32
    %cst_12 = arith.constant 1.500000e+01 : f32
    %24 = vector.broadcast %cst_11 : f32 to vector<1x256xf32>
    %25 = arith.maximumf %24, %23 : vector<1x256xf32>
    %26 = vector.broadcast %cst_12 : f32 to vector<1x256xf32>
    %27 = arith.minimumf %26, %25 : vector<1x256xf32>
    %cst_13 = arith.constant 1.000000e+00 : f32
    %28 = vector.broadcast %cst_13 : f32 to vector<1x256xf32>
    %29 = arith.mulf %3, %28 : vector<1x256xf32>
    %cst_14 = arith.constant 0.000000e+00 : f32
    %cst_15 = arith.constant 1.500000e+01 : f32
    %30 = vector.broadcast %cst_14 : f32 to vector<1x256xf32>
    %31 = arith.maximumf %30, %29 : vector<1x256xf32>
    %32 = vector.broadcast %cst_15 : f32 to vector<1x256xf32>
    %33 = arith.minimumf %32, %31 : vector<1x256xf32>
    %34 = math.floor %27 : vector<1x256xf32>
    %35 = math.floor %33 : vector<1x256xf32>
    %36 = arith.subf %27, %34 : vector<1x256xf32>
    %37 = arith.subf %33, %35 : vector<1x256xf32>
    %38 = arith.fptosi %34 : vector<1x256xf32> to vector<1x256xi32>
    %39 = arith.fptosi %35 : vector<1x256xf32> to vector<1x256xi32>
    %c1_i32 = arith.constant 1 : i32
    %40 = vector.broadcast %c1_i32 : i32 to vector<1x256xi32>
    %41 = arith.addi %38, %40 : vector<1x256xi32>
    %c15_i32 = arith.constant 15 : i32
    %42 = vector.broadcast %c15_i32 : i32 to vector<1x256xi32>
    %43 = arith.minsi %41, %42 : vector<1x256xi32>
    %c1_i32_16 = arith.constant 1 : i32
    %44 = vector.broadcast %c1_i32_16 : i32 to vector<1x256xi32>
    %45 = arith.addi %39, %44 : vector<1x256xi32>
    %c15_i32_17 = arith.constant 15 : i32
    %46 = vector.broadcast %c15_i32_17 : i32 to vector<1x256xi32>
    %47 = arith.minsi %45, %46 : vector<1x256xi32>
    %48 = tpu.iota {dimensions = array<i32: 0>} : vector<16x256xi32>
    %49 = vector.broadcast %38 : vector<1x256xi32> to vector<16x256xi32>
    %50 = arith.cmpi eq, %48, %49 : vector<16x256xi32>
    %cst_18 = arith.constant 1.000000e+00 : f32
    %51 = vector.broadcast %cst_18 : f32 to vector<1x256xf32>
    %52 = arith.subf %51, %36 : vector<1x256xf32>
    %cst_19 = arith.constant 0.000000e+00 : f32
    %53 = vector.shape_cast %52 : vector<1x256xf32> to vector<1x256xf32>
    %54 = vector.broadcast %53 : vector<1x256xf32> to vector<16x256xf32>
    %55 = vector.broadcast %cst_19 : f32 to vector<16x256xf32>
    %56 = arith.select %50, %54, %55 : vector<16x256xi1>, vector<16x256xf32>
    %57 = vector.broadcast %43 : vector<1x256xi32> to vector<16x256xi32>
    %58 = arith.cmpi eq, %48, %57 : vector<16x256xi32>
    %cst_20 = arith.constant 0.000000e+00 : f32
    %59 = vector.shape_cast %36 : vector<1x256xf32> to vector<1x256xf32>
    %60 = vector.broadcast %59 : vector<1x256xf32> to vector<16x256xf32>
    %61 = vector.broadcast %cst_20 : f32 to vector<16x256xf32>
    %62 = arith.select %58, %60, %61 : vector<16x256xi1>, vector<16x256xf32>
    %63 = arith.addf %56, %62 : vector<16x256xf32>
    %64 = tpu.iota {dimensions = array<i32: 0>} : vector<16x256xi32>
    %65 = vector.broadcast %39 : vector<1x256xi32> to vector<16x256xi32>
    %66 = arith.cmpi eq, %64, %65 : vector<16x256xi32>
    %cst_21 = arith.constant 1.000000e+00 : f32
    %67 = vector.broadcast %cst_21 : f32 to vector<1x256xf32>
    %68 = arith.subf %67, %37 : vector<1x256xf32>
    %cst_22 = arith.constant 0.000000e+00 : f32
    %69 = vector.shape_cast %68 : vector<1x256xf32> to vector<1x256xf32>
    %70 = vector.broadcast %69 : vector<1x256xf32> to vector<16x256xf32>
    %71 = vector.broadcast %cst_22 : f32 to vector<16x256xf32>
    %72 = arith.select %66, %70, %71 : vector<16x256xi1>, vector<16x256xf32>
    %73 = vector.broadcast %47 : vector<1x256xi32> to vector<16x256xi32>
    %74 = arith.cmpi eq, %64, %73 : vector<16x256xi32>
    %cst_23 = arith.constant 0.000000e+00 : f32
    %75 = vector.shape_cast %37 : vector<1x256xf32> to vector<1x256xf32>
    %76 = vector.broadcast %75 : vector<1x256xf32> to vector<16x256xf32>
    %77 = vector.broadcast %cst_23 : f32 to vector<16x256xf32>
    %78 = arith.select %74, %76, %77 : vector<16x256xi1>, vector<16x256xf32>
    %79 = arith.addf %72, %78 : vector<16x256xf32>
    %c0_24 = arith.constant 0 : index
    %c0_25 = arith.constant 0 : index
    %c0_26 = arith.constant 0 : index
    %80 = vector.load %arg2[%c0_24, %c0_25, %c0_26] : memref<1x48x16xf32, #tpu.memory_space<vmem>>, vector<1x48x16xf32>
    %81 = vector.shape_cast %80 : vector<1x48x16xf32> to vector<48x16xf32>
    %cst_27 = arith.constant dense<0.000000e+00> : vector<48x256xf32>
    %82 = tpu.matmul %81, %63, %cst_27 {dimension_numbers = #tpu.dot_dimension_numbers<[1], [0], [0], [1], [0, 0, 1, 1], [], []>} : vector<48x16xf32>, vector<16x256xf32>, vector<48x256xf32> -> vector<48x256xf32>
    %83 = vector.extract_strided_slice %82 {offsets = [0, 0], sizes = [16, 256], strides = [1, 1]} : vector<48x256xf32> to vector<16x256xf32>
    %84 = arith.mulf %83, %79 : vector<16x256xf32>
    %cst_28 = arith.constant dense<0.000000e+00> : vector<256xf32>
    %85 = vector.multi_reduction <add>, %84, %cst_28 [0] : vector<16x256xf32> to vector<256xf32>
    %86 = vector.shape_cast %85 : vector<256xf32> to vector<1x256xf32>
    %87 = vector.extract_strided_slice %82 {offsets = [16, 0], sizes = [16, 256], strides = [1, 1]} : vector<48x256xf32> to vector<16x256xf32>
    %88 = arith.mulf %87, %79 : vector<16x256xf32>
    %cst_29 = arith.constant dense<0.000000e+00> : vector<256xf32>
    %89 = vector.multi_reduction <add>, %88, %cst_29 [0] : vector<16x256xf32> to vector<256xf32>
    %90 = vector.shape_cast %89 : vector<256xf32> to vector<1x256xf32>
    %91 = vector.extract_strided_slice %82 {offsets = [32, 0], sizes = [16, 256], strides = [1, 1]} : vector<48x256xf32> to vector<16x256xf32>
    %92 = arith.mulf %91, %79 : vector<16x256xf32>
    %cst_30 = arith.constant dense<0.000000e+00> : vector<256xf32>
    %93 = vector.multi_reduction <add>, %92, %cst_30 [0] : vector<16x256xf32> to vector<256xf32>
    %94 = vector.shape_cast %93 : vector<256xf32> to vector<1x256xf32>
    %95 = tpu.concatenate %86, %90, %94 in 0 : vector<1x256xf32>, vector<1x256xf32>, vector<1x256xf32> -> vector<3x256xf32>
    %c0_31 = arith.constant 0 : index
    %c0_32 = arith.constant 0 : index
    %c0_33 = arith.constant 0 : index
    %96 = vector.load %arg4[%c0_31, %c0_32, %c0_33] : memref<1x3x256xf32, #tpu.memory_space<vmem>>, vector<1x3x256xf32>
    %97 = vector.shape_cast %96 : vector<1x3x256xf32> to vector<3x256xf32>
    %98 = vector.shape_cast %95 : vector<3x256xf32> to vector<1x3x256xf32>
    tpu.vector_store %arg4[%c0_31, %c0_32, %c0_33], %98 {strides = array<i32>} : memref<1x3x256xf32, #tpu.memory_space<vmem>>, vector<1x3x256xf32>,
    return
  }
  func.func @transform_0(%arg0: i32, %arg1: i32) -> (i32, i32, i32) {
    %c0_i32 = arith.constant 0 : i32
    %c0_i32_0 = arith.constant 0 : i32
    %c0_i32_1 = arith.constant 0 : i32
    return %arg0, %c0_i32, %c0_i32_0 : i32, i32, i32
  }
  func.func @transform_1(%arg0: i32, %arg1: i32) -> (i32, i32, i32) {
    %c0_i32 = arith.constant 0 : i32
    %c0_i32_0 = arith.constant 0 : i32
    return %arg0, %c0_i32, %arg1 : i32, i32, i32
  }
  func.func @transform_2(%arg0: i32, %arg1: i32) -> (i32, i32, i32) {
    %c0_i32 = arith.constant 0 : i32
    %c0_i32_0 = arith.constant 0 : i32
    return %arg0, %c0_i32, %arg1 : i32, i32, i32
  }
  func.func @transform_3(%arg0: i32, %arg1: i32) -> (i32, i32, i32) {
    %c0_i32 = arith.constant 0 : i32
    %c0_i32_0 = arith.constant 0 : i32
    return %arg0, %c0_i32, %arg1 : i32, i32, i32
  }
}

</mosaic_0001>

<llo_original>
// kernel: tpu_custom_call.1
$region0: #{tpu_custom_call.1}
  #allocation0 [shape = 'u32[]', space=smem, size = 0x4, offset = 0x4, fixed_abs, tag = 'smem constant byte address 0x4 - core index']
  #allocation1 [shape = 'u32[144,128]{1,0:T(1,128)}', space=vmem, size = 0x12000, scoped, tag = 'internal scratch']
  %s0 = inlined_call_operand.vmem [shape: f32[2,48,16], index: 0, kind: input, shape index: {}]
  %s1 = inlined_call_operand.vmem [shape: f32[2,2,256], index: 1, kind: input, shape index: {}]
  %s2 = inlined_call_operand.vmem [shape: f32[2,3,256], index: 2, kind: output, shape index: {0}]
  %s3 = inlined_call_operand.hbm [shape: f32[2,1,256], index: 3, kind: output, shape index: {1}]
  %4 = xla_tuple %s2, %s3
  %s5 = sld [smem:[#allocation0]]
  $region49: #{tpu_custom_call.1} parent=0
    _
  %s7 = ssub.s32 1, %s5
  %s8 = scalar_select 0, %s7, %s5
  $region1: #{tpu_custom_call.1} parent=0
    #allocation2 [shape = 'u8[2048]{0}', space=vmem, size = 0x800, scoped, tag = 'output window, operand 1']
    #allocation3 [shape = 's32[2]{0}', space=sflag, size = 0x8, scoped, tag = 'scoped memory for tpu_custom_call.1']
    %9 = vsyncpa [#allocation3], 0
    %s10 = scalar_lea.sflag [#allocation3], 1
    %11 = vsyncpa %s10, 0
    loop: start=0, step=1, limit=4
    $region2: #{tpu_custom_call.1} parent=1 // loop_pre_header
      _
    $region3: #{tpu_custom_call.1} parent=1 // loop_header
      %s13 = sphi 0, %s17
      %p14 = scmp.ge.s32.totalorder %s13, 4
      %s20 = sphi 0, %s32
      %s21 = sphi 0, %s28
      %s22 = sphi 0, %s20
      %s23 = sphi 0, %s21
      %s24 = sphi 0, %s22
      %s25 = sphi 0, %s23
      %s35 = sphi 0, %s37
      %s38 = sphi 0, %s35
      %s39 = sphi 0, %s38
      %s55 = sphi 0, %s39
      %s63 = sphi 0, %s65
      %s66 = sphi 0, %s63
      %s67 = sphi 0, %s66
      %s83 = sphi 0, %s67
      %s91 = sphi 0, %s93
      %s94 = sphi 0, %s91
      %s95 = sphi 0, %s94
      %s111 = sphi 0, %s95
      %s119 = sphi 0, %s121
      %s122 = sphi 0, %s119
      %s123 = sphi 0, %s122
      %s139 = sphi 0, %s123
    $region4: #{tpu_custom_call.1} parent=1 // loop_header_branch
      %16 = sbr.rel (%p14) target = $region8
    $region5: #{tpu_custom_call.1} parent=1 // loop_body
      %s18 = ssub.s32 %s13, 1
      %s19 = ssub.s32 %s13, 2
      %s26 = sadd.s32 1, %s21
      %p27 = scmp.ge.s32.totalorder %s26, 1
      %s28 = scalar_select %p27, 0, %s26
      %s29 = sadd.s32 1, %s20
      %s30 = scalar_select %p27, %s29, %s20
      %p31 = scmp.ge.s32.totalorder %s30, 2
      %s32 = scalar_select %p31, 0, %s30
      %s33 = ssub.s32 %s20, %s32
      %p34 = scmp.eq.s32.totalorder %s33, 0
      %s36 = sadd.s32 %s35, 1
      %s37 = scalar_select %p34, %s35, %s36
      %p40 = pneg %p34
      %p41 = scmp.eq.s32.totalorder %s13, 1
      %p42 = por %p40, %p41
      %p43 = scmp.ne.s32.totalorder %s35, %s38
      %p44 = scmp.eq.s32.totalorder %s13, 0
      %p45 = por %p43, %p44
      %p46 = scmp.ne.s32.totalorder %s35, %s38
      %p47 = scmp.eq.s32.totalorder %s18, 1
      %p48 = por %p46, %p47
      %p49 = scmp.ne.s32.totalorder %s38, %s39
      %p50 = scmp.eq.s32.totalorder %s18, 0
      %p51 = por %p49, %p50
      %p52 = scmp.ne.s32.totalorder %s38, %s39
      %p53 = scmp.eq.s32.totalorder %s19, 1
      %p54 = por %p52, %p53
      %p56 = scmp.ne.s32.totalorder %s39, %s55
      %p57 = scmp.eq.s32.totalorder %s19, 0
      %p58 = por %p56, %p57
      %s59 = ssub.s32 %s20, %s32
      %s60 = ssub.s32 %s21, %s28
      %s61 = sor.u32 %s59, %s60
      %p62 = scmp.eq.s32.totalorder %s61, 0
      %s64 = sadd.s32 %s63, 1
      %s65 = scalar_select %p62, %s63, %s64
      %p68 = pneg %p62
      %p69 = scmp.eq.s32.totalorder %s13, 1
      %p70 = por %p68, %p69
      %p71 = scmp.ne.s32.totalorder %s63, %s66
      %p72 = scmp.eq.s32.totalorder %s13, 0
      %p73 = por %p71, %p72
      %p74 = scmp.ne.s32.totalorder %s63, %s66
      %p75 = scmp.eq.s32.totalorder %s18, 1
      %p76 = por %p74, %p75
      %p77 = scmp.ne.s32.totalorder %s66, %s67
      %p78 = scmp.eq.s32.totalorder %s18, 0
      %p79 = por %p77, %p78
      %p80 = scmp.ne.s32.totalorder %s66, %s67
      %p81 = scmp.eq.s32.totalorder %s19, 1
      %p82 = por %p80, %p81
      %p84 = scmp.ne.s32.totalorder %s67, %s83
      %p85 = scmp.eq.s32.totalorder %s19, 0
      %p86 = por %p84, %p85
      %s87 = ssub.s32 %s20, %s32
      %s88 = ssub.s32 %s21, %s28
      %s89 = sor.u32 %s87, %s88
      %p90 = scmp.eq.s32.totalorder %s89, 0
      %s92 = sadd.s32 %s91, 1
      %s93 = scalar_select %p90, %s91, %s92
      %p96 = pneg %p90
      %p97 = scmp.eq.s32.totalorder %s13, 1
      %p98 = por %p96, %p97
      %p99 = scmp.ne.s32.totalorder %s91, %s94
      %p100 = scmp.eq.s32.totalorder %s13, 0
      %p101 = por %p99, %p100
      %p102 = scmp.ne.s32.totalorder %s91, %s94
      %p103 = scmp.eq.s32.totalorder %s18, 1
      %p104 = por %p102, %p103
      %p105 = scmp.ne.s32.totalorder %s94, %s95
      %p106 = scmp.eq.s32.totalorder %s18, 0
      %p107 = por %p105, %p106
      %p108 = scmp.ne.s32.totalorder %s94, %s95
      %p109 = scmp.eq.s32.totalorder %s19, 1
      %p110 = por %p108, %p109
      %p112 = scmp.ne.s32.totalorder %s95, %s111
      %p113 = scmp.eq.s32.totalorder %s19, 0
      %p114 = por %p112, %p113
      %s115 = ssub.s32 %s20, %s32
      %s116 = ssub.s32 %s21, %s28
      %s117 = sor.u32 %s115, %s116
      %p118 = scmp.eq.s32.totalorder %s117, 0
      %s120 = sadd.s32 %s119, 1
      %s121 = scalar_select %p118, %s119, %s120
      %p124 = pneg %p118
      %p125 = scmp.eq.s32.totalorder %s13, 1
      %p126 = por %p124, %p125
      %p127 = scmp.ne.s32.totalorder %s119, %s122
      %p128 = scmp.eq.s32.totalorder %s13, 0
      %p129 = por %p127, %p128
      %p130 = scmp.ne.s32.totalorder %s119, %s122
      %p131 = scmp.eq.s32.totalorder %s18, 1
      %p132 = por %p130, %p131
      %p133 = scmp.ne.s32.totalorder %s122, %s123
      %p134 = scmp.eq.s32.totalorder %s18, 0
      %p135 = por %p133, %p134
      %p136 = scmp.ne.s32.totalorder %s122, %s123
      %p137 = scmp.eq.s32.totalorder %s19, 1
      %p138 = por %p136, %p137
      %p140 = scmp.ne.s32.totalorder %s123, %s139
      %p141 = scmp.eq.s32.totalorder %s19, 0
      %p142 = por %p140, %p141
      %p143 = scmp.le.s32.totalorder 1, %s13
      %p144 = scmp.lt.s32.totalorder %s13, 3
      %p145 = pnand %p143, %p144
      %p146 = pneg %p145
      // Predicated region
      $region9: #{tpu_custom_call.1} parent=5 // pred_check
        _
      $region10: #{tpu_custom_call.1} parent=5 // pred_check_branch
        %148 = sbr.rel (%p145) target = $region12
      $region11: #{tpu_custom_call.1} parent=5 // pred_region
        %s149 = ssub.s32 %s13, 1
      $region12: #{tpu_custom_call.1} parent=5 // pred_fallthru
        _
      %p150 = scmp.lt.s32.totalorder %s13, 2
      // Predicated region
      $region13: #{tpu_custom_call.1} parent=5 // pred_check
        %p151 = pneg %p150
      $region14: #{tpu_custom_call.1} parent=5 // pred_check_branch
        %153 = sbr.rel (%p151) target = $region16
      $region15: #{tpu_custom_call.1} parent=5 // pred_region
        // Predicated region
        $region17: #{tpu_custom_call.1} parent=15 // pred_check
          %p154 = pneg %p45
        $region18: #{tpu_custom_call.1} parent=15 // pred_check_branch
          %156 = sbr.rel (%p154) target = $region20
        $region19: #{tpu_custom_call.1} parent=15 // pred_region
          %p157 = scmp.lt.s32.totalorder %s20, 1
          %s158 = scalar_select %p157, %s20, 1
          %s159 = smul.addr %s158, 6
          %s160 = smul.addr %s159, 8
          %s161 = scalar_lea.vmem %s0, %s160
        $region20: #{tpu_custom_call.1} parent=15 // pred_fallthru
          _
        // Predicated region
        $region21: #{tpu_custom_call.1} parent=15 // pred_check
          %p162 = pneg %p73
        $region22: #{tpu_custom_call.1} parent=15 // pred_check_branch
          %164 = sbr.rel (%p162) target = $region24
        $region23: #{tpu_custom_call.1} parent=15 // pred_region
          %s165 = smul.u32 2, %s21
          %p166 = scmp.lt.s32.totalorder %s20, 1
          %s167 = scalar_select %p166, %s20, 1
          %p168 = scmp.lt.s32.totalorder %s165, 1
          %s169 = scalar_select %p168, %s165, 1
          %s170 = smul.addr %s167, 2
          %s171 = sadd.s32 %s169, %s170
          %s172 = smul.addr %s171, 2
          %s173 = scalar_lea.vmem %s1, %s172
          %s174 = smul.u32 2, %s21
        $region24: #{tpu_custom_call.1} parent=15 // pred_fallthru
          _
      $region16: #{tpu_custom_call.1} parent=5 // pred_fallthru
        _
      %p175 = scmp.le.s32.totalorder 1, %s13
      %p176 = scmp.lt.s32.totalorder %s13, 3
      %p177 = pnand %p175, %p176
      %p178 = pneg %p177
      // Predicated region
      $region25: #{tpu_custom_call.1} parent=5 // pred_check
        _
      $region26: #{tpu_custom_call.1} parent=5 // pred_check_branch
        %180 = sbr.rel (%p177) target = $region28
      $region27: #{tpu_custom_call.1} parent=5 // pred_region
        %s181 = ssub.s32 %s13, 1
        %p182 = scmp.lt.s32.totalorder %s22, 1
        %s183 = scalar_select %p182, %s22, 1
        %s184 = smul.addr %s183, 6
        %s185 = smul.addr %s184, 8
        %s186 = scalar_lea.vmem %s0, %s185
        %p187 = pneg %p51
        %p188 = pneg %p48
        %s189 = smul.u32 2, %s23
        %p190 = scmp.lt.s32.totalorder %s22, 1
        %s191 = scalar_select %p190, %s22, 1
        %p192 = scmp.lt.s32.totalorder %s189, 1
        %s193 = scalar_select %p192, %s189, 1
        %s194 = smul.addr %s191, 2
        %s195 = sadd.s32 %s193, %s194
        %s196 = smul.addr %s195, 2
        %s197 = scalar_lea.vmem %s1, %s196
        %p198 = pneg %p79
        %p199 = pneg %p76
        %p200 = pneg %p107
        %p201 = pneg %p104
        %s202 = smul.u32 2, %s23
        %p203 = scmp.lt.s32.totalorder %s22, 1
        %s204 = scalar_select %p203, %s22, 1
        %p205 = scmp.lt.s32.totalorder %s202, 1
        %s206 = scalar_select %p205, %s202, 1
        %s207 = smul.addr %s204, 2
        %s208 = sadd.s32 %s206, %s207
        %s209 = smul.addr %s208, 4
        %s210 = scalar_lea.vmem %s2, %s209
        %p211 = pneg %p135
        %p212 = pneg %p132
        %s213 = sand.u32 %s122, 1
        %s214 = scalar_lea.sflag [#allocation3], %s213
        %s215 = sand.u32 %s122, 1
        %s216 = smul.addr %s215, 2
        %s217 = scalar_lea.vmem [#allocation2], %s216
        %p218 = scmp.lt.s32.totalorder %s22, 1
        %s219 = scalar_select %p218, %s22, 1
        %s220 = smul.addr %s219, 6
        %s221 = smul.addr %s220, 8
        %s222 = scalar_lea.vmem %s0, %s221
        %s223 = smul.u32 2, %s23
        %p224 = scmp.lt.s32.totalorder %s22, 1
        %s225 = scalar_select %p224, %s22, 1
        %p226 = scmp.lt.s32.totalorder %s223, 1
        %s227 = scalar_select %p226, %s223, 1
        %s228 = smul.addr %s225, 2
        %s229 = sadd.s32 %s227, %s228
        %s230 = smul.addr %s229, 2
        %s231 = scalar_lea.vmem %s1, %s230
        %s232 = smul.u32 2, %s23
        %s233 = smul.u32 2, %s23
        %p234 = scmp.lt.s32.totalorder %s22, 1
        %s235 = scalar_select %p234, %s22, 1
        %p236 = scmp.lt.s32.totalorder %s233, 1
        %s237 = scalar_select %p236, %s233, 1
        %s238 = smul.addr %s235, 2
        %s239 = sadd.s32 %s237, %s238
        %s240 = smul.addr %s239, 4
        %s241 = scalar_lea.vmem %s2, %s240
        %s242 = smul.u32 2, %s23
        %s243 = smul.u32 2, %s23
        %v244 = vld [vmem:[%s231] ss:$2 sm:$0x3]
        %s245 = scalar_lea.vmem %s231, 1
        %v246 = vld [vmem:[%s245] ss:$2 sm:$0x3]
        %v247 = vround.ne.pseudo %v244
        %v248 = vround.ne.pseudo %v246
        %vm249 = vcmp.ge.f32.partialorder %v247, 0.0
        %vm250 = vcmp.le.f32.partialorder %v247, 15.0
        %vm251 = vmand %vm249, %vm250
        %vm252 = vcmp.ge.f32.partialorder %v248, 0.0
        %vm253 = vmand %vm251, %vm252
        %vm254 = vcmp.le.f32.partialorder %v248, 15.0
        %vm255 = vmand %vm253, %vm254
        %v256 = vsel %vm255, 1, 0
        %v257 = vcvt.s32.f32 %v256
        %v258 = vlaneseq
        %vm259 = vcmp.ge.s32.totalorder %v258, 0
        %vm260 = vcmp.lt.s32.totalorder %v258, 256
        %vm261 = vmand %vm259, %vm260
        %262 = vst.msk [vmem:[%s217] sm:$0x3] %vm261, %v257
        %v263 = vmax.f32 %v244, 0.0
        %v264 = vmin.f32 %v263, 15.0
        %v265 = vmax.f32 %v246, 0.0
        %v266 = vmin.f32 %v265, 15.0
        %v267 = vfloor.f32 %v264
        %v268 = vfloor.f32 %v266
        %v269 = vsub.f32 %v264, %v267
        %v270 = vsub.f32 %v266, %v268
        %v271 = vcvt.f32.s32.to.zero.pseudo %v267
        %v272 = vcvt.f32.s32.to.zero.pseudo %v268
        %v273 = vadd.s32 %v271, 1
        %vm274 = vcmp.lt.s32.totalorder %v273, 15
        %v275 = vsel %vm274, %v273, 15
        %v276 = vadd.s32 %v272, 1
        %vm277 = vcmp.lt.s32.totalorder %v276, 15
        %v278 = vsel %vm277, %v276, 15
        %v279 = vlaneseq
        %v280 = vshrl.u32 %v279, 7
        %v281 = vadd.s32 %v280, 8
        %v282 = vlaneseq
        %v283 = vshrl.u32 %v282, 7
        %v284 = vsub.s32 0, %v283
        %v285 = vrot.slane %v271, %v284
        %v286 = vlaneseq
        %v287 = vshrl.u32 %v286, 7
        %v288 = vsub.s32 1, %v287
        %v289 = vrot.slane %v271, %v288
        %vm290 = vcmp.eq.s32.totalorder %v280, %v285
        %vm291 = vcmp.eq.s32.totalorder %v280, %v289
        %vm292 = vcmp.eq.s32.totalorder %v281, %v285
        %vm293 = vcmp.eq.s32.totalorder %v281, %v289
        %v294 = vsub.f32 1.0, %v269
        %v296 = vlaneseq
        %v297 = vshrl.u32 %v296, 7
        %v298 = vsub.s32 0, %v297
        %v299 = vrot.slane %v294, %v298
        %v300 = vlaneseq
        %v301 = vshrl.u32 %v300, 7
        %v302 = vsub.s32 1, %v301
        %v303 = vrot.slane %v294, %v302
        %v306 = vsel %vm290, %v299, 0.0
        %v307 = vsel %vm291, %v303, 0.0
        %v308 = vsel %vm292, %v299, 0.0
        %v309 = vsel %vm293, %v303, 0.0
        %v310 = vlaneseq
        %v311 = vshrl.u32 %v310, 7
        %v312 = vsub.s32 0, %v311
        %v313 = vrot.slane %v275, %v312
        %v314 = vlaneseq
        %v315 = vshrl.u32 %v314, 7
        %v316 = vsub.s32 1, %v315
        %v317 = vrot.slane %v275, %v316
        %vm318 = vcmp.eq.s32.totalorder %v280, %v313
        %vm319 = vcmp.eq.s32.totalorder %v280, %v317
        %vm320 = vcmp.eq.s32.totalorder %v281, %v313
        %vm321 = vcmp.eq.s32.totalorder %v281, %v317
        %v323 = vlaneseq
        %v324 = vshrl.u32 %v323, 7
        %v325 = vsub.s32 0, %v324
        %v326 = vrot.slane %v269, %v325
        %v327 = vlaneseq
        %v328 = vshrl.u32 %v327, 7
        %v329 = vsub.s32 1, %v328
        %v330 = vrot.slane %v269, %v329
        %v333 = vsel %vm318, %v326, 0.0
        %v334 = vsel %vm319, %v330, 0.0
        %v335 = vsel %vm320, %v326, 0.0
        %v336 = vsel %vm321, %v330, 0.0
        %v337 = vadd.f32 %v306, %v333
        %v338 = vadd.f32 %v307, %v334
        %v339 = vadd.f32 %v308, %v335
        %v340 = vadd.f32 %v309, %v336
        %v341 = vlaneseq
        %v342 = vshrl.u32 %v341, 7
        %v343 = vsub.s32 0, %v342
        %v344 = vrot.slane %v272, %v343
        %v345 = vlaneseq
        %v346 = vshrl.u32 %v345, 7
        %v347 = vsub.s32 1, %v346
        %v348 = vrot.slane %v272, %v347
        %vm349 = vcmp.eq.s32.totalorder %v280, %v344
        %vm350 = vcmp.eq.s32.totalorder %v280, %v348
        %vm351 = vcmp.eq.s32.totalorder %v281, %v344
        %vm352 = vcmp.eq.s32.totalorder %v281, %v348
        %v353 = vsub.f32 1.0, %v270
        %v355 = vlaneseq
        %v356 = vshrl.u32 %v355, 7
        %v357 = vsub.s32 0, %v356
        %v358 = vrot.slane %v353, %v357
        %v359 = vlaneseq
        %v360 = vshrl.u32 %v359, 7
        %v361 = vsub.s32 1, %v360
        %v362 = vrot.slane %v353, %v361
        %v365 = vsel %vm349, %v358, 0.0
        %v366 = vsel %vm350, %v362, 0.0
        %v367 = vsel %vm351, %v358, 0.0
        %v368 = vsel %vm352, %v362, 0.0
        %v369 = vlaneseq
        %v370 = vshrl.u32 %v369, 7
        %v371 = vsub.s32 0, %v370
        %v372 = vrot.slane %v278, %v371
        %v373 = vlaneseq
        %v374 = vshrl.u32 %v373, 7
        %v375 = vsub.s32 1, %v374
        %v376 = vrot.slane %v278, %v375
        %vm377 = vcmp.eq.s32.totalorder %v280, %v372
        %vm378 = vcmp.eq.s32.totalorder %v280, %v376
        %vm379 = vcmp.eq.s32.totalorder %v281, %v372
        %vm380 = vcmp.eq.s32.totalorder %v281, %v376
        %v382 = vlaneseq
        %v383 = vshrl.u32 %v382, 7
        %v384 = vsub.s32 0, %v383
        %v385 = vrot.slane %v270, %v384
        %v386 = vlaneseq
        %v387 = vshrl.u32 %v386, 7
        %v388 = vsub.s32 1, %v387
        %v389 = vrot.slane %v270, %v388
        %v392 = vsel %vm377, %v385, 0.0
        %v393 = vsel %vm378, %v389, 0.0
        %v394 = vsel %vm379, %v385, 0.0
        %v395 = vsel %vm380, %v389, 0.0
        %v396 = vadd.f32 %v365, %v392
        %v397 = vadd.f32 %v366, %v393
        %v398 = vadd.f32 %v367, %v394
        %v399 = vadd.f32 %v368, %v395
        %v400 = vld [vmem:[%s222] sm:$0xff]
        %v401 = vld [vmem:[%s222 + $0x8] sm:$0xff]
        %v402 = vld [vmem:[%s222 + $0x10] sm:$0xff]
        %v403 = vld [vmem:[%s222 + $0x18] sm:$0xff]
        %v404 = vld [vmem:[%s222 + $0x20] sm:$0xff]
        %v405 = vld [vmem:[%s222 + $0x28] sm:$0xff]
        %vm406 = vcmask 130048
        %v408 = vsel %vm406, %v400, 0
        %v411 = vsel %vm406, %v401, 0
        %v414 = vsel %vm406, %v402, 0
        %v417 = vsel %vm406, %v403, 0
        %v420 = vsel %vm406, %v404, 0
        %v423 = vsel %vm406, %v405, 0
        %425 = vmatprep.subr.mxu0 %v338
        %426 = vmatpush1.msra.mxu0 %v337
        %427 = vmatprep.subr.mxu0 %v340
        %428 = vmatpush1.msra.mxu0 %v339
        %429 = vmatprep.subr.mxu0 0.0
        %430 = vmatpush1.msra.mxu0 0.0
        %431 = vmatprep.subr.mxu0 0.0
        %432 = vmatpush1.msra.mxu0 0.0
        %433 = vmatprep.subr.mxu0 0.0
        %434 = vmatpush1.msra.mxu0 0.0
        %435 = vmatprep.subr.mxu0 0.0
        %436 = vmatpush1.msra.mxu0 0.0
        %437 = vmatprep.subr.mxu0 0.0
        %438 = vmatpush1.msra.mxu0 0.0
        %439 = vmatprep.subr.mxu0 0.0
        %440 = vmatpush1.msra.mxu0 0.0
        %441 = vmatprep.subr.mxu0 0.0
        %442 = vmatpush1.msra.mxu0 0.0
        %443 = vmatprep.subr.mxu0 0.0
        %444 = vmatpush1.msra.mxu0 0.0
        %445 = vmatprep.subr.mxu0 0.0
        %446 = vmatpush1.msra.mxu0 0.0
        %447 = vmatprep.subr.mxu0 0.0
        %448 = vmatpush1.msra.mxu0 0.0
        %449 = vmatprep.subr.mxu0 0.0
        %450 = vmatpush1.msra.mxu0 0.0
        %451 = vmatprep.subr.mxu0 0.0
        %452 = vmatpush1.msra.mxu0 0.0
        %453 = vmatprep.subr.mxu0 0.0
        %454 = vmatpush1.msra.mxu0 0.0
        %455 = vmatprep.subr.mxu0 0.0
        %456 = vmatpush1.msra.mxu0 0.0
        %457 = vmatprep.subr.mxu0 0.0
        %458 = vmatpush1.msra.mxu0 0.0
        %459 = vmatprep.subr.mxu0 0.0
        %460 = vmatpush1.msra.mxu0 0.0
        %461 = vmatprep.subr.mxu0 0.0
        %462 = vmatpush1.msra.mxu0 0.0
        %463 = vmatprep.subr.mxu0 0.0
        %464 = vmatpush1.msra.mxu0 0.0
        %465 = vmatprep.subr.mxu0 0.0
        %466 = vmatpush1.msra.mxu0 0.0
        %467 = vmatprep.subr.mxu0 0.0
        %468 = vmatpush1.msra.mxu0 0.0
        %469 = vmatprep.subr.mxu0 0.0
        %470 = vmatpush1.msra.mxu0 0.0
        %471 = vmatprep.subr.mxu0 0.0
        %472 = vmatpush1.msra.mxu0 0.0
        %473 = vmatprep.subr.mxu0 0.0
        %474 = vmatpush1.msra.mxu0 0.0
        %475 = vmatprep.subr.mxu0 0.0
        %476 = vmatpush1.msra.mxu0 0.0
        %477 = vmatprep.subr.mxu0 0.0
        %478 = vmatpush1.msra.mxu0 0.0
        %479 = vmatprep.subr.mxu0 0.0
        %480 = vmatpush1.msra.mxu0 0.0
        %481 = vmatprep.subr.mxu0 0.0
        %482 = vmatpush1.msra.mxu0 0.0
        %483 = vmatprep.subr.mxu0 0.0
        %484 = vmatpush1.msra.mxu0 0.0
        %485 = vmatprep.subr.mxu0 0.0
        %486 = vmatpush1.msra.mxu0 0.0
        %487 = vmatprep.subr.mxu0 0.0
        %488 = vmatpush1.msra.mxu0 0.0
        %489 = vmatprep.mubr.f32.mxu0 0.0
        %490 = vmatmul.mubr.f32.gmra.mrb[0].mxu0 %v408
        %v491 = vpop.f32.mrb[0].mxu0
        %v492 = vadd.f32 0.0, %v491
        %v493 = vpop.f32.mrb[0].mxu0
        %v494 = vadd.f32 0.0, %v493
        %495 = vmatprep.mubr.f32.mxu0 0.0
        %496 = vmatmul.mubr.f32.gmra.mrb[0].mxu0 %v411
        %v497 = vpop.f32.mrb[0].mxu0
        %v498 = vadd.f32 0.0, %v497
        %v499 = vpop.f32.mrb[0].mxu0
        %v500 = vadd.f32 0.0, %v499
        %501 = vmatprep.mubr.f32.mxu0 0.0
        %502 = vmatmul.mubr.f32.gmra.mrb[0].mxu0 %v414
        %v503 = vpop.f32.mrb[0].mxu0
        %v504 = vadd.f32 0.0, %v503
        %v505 = vpop.f32.mrb[0].mxu0
        %v506 = vadd.f32 0.0, %v505
        %507 = vmatprep.mubr.f32.mxu0 0.0
        %508 = vmatmul.mubr.f32.gmra.mrb[0].mxu0 %v417
        %v509 = vpop.f32.mrb[0].mxu0
        %v510 = vadd.f32 0.0, %v509
        %v511 = vpop.f32.mrb[0].mxu0
        %v512 = vadd.f32 0.0, %v511
        %513 = vmatprep.mubr.f32.mxu0 0.0
        %514 = vmatmul.mubr.f32.gmra.mrb[0].mxu0 %v420
        %v515 = vpop.f32.mrb[0].mxu0
        %v516 = vadd.f32 0.0, %v515
        %v517 = vpop.f32.mrb[0].mxu0
        %v518 = vadd.f32 0.0, %v517
        %519 = vmatprep.mubr.f32.mxu0 0.0
        %520 = vmatmul.mubr.f32.gmra.mrb[0].mxu0 %v423
        %v521 = vpop.f32.mrb[0].mxu0
        %v522 = vadd.f32 0.0, %v521
        %v523 = vpop.f32.mrb[0].mxu0
        %v524 = vadd.f32 0.0, %v523
        %525 = vdwg.mxu0
        %v526 = vmul.f32 %v492, %v396
        %v527 = vmul.f32 %v494, %v397
        %v528 = vmul.f32 %v498, %v398
        %v529 = vmul.f32 %v500, %v399
        %v530 = vadd.f32 %v526, %v528
        %v531 = vrot.slane %v530, 4
        %v532 = vadd.f32 %v530, %v531
        %v533 = vrot.slane %v532, 2
        %v534 = vadd.f32 %v532, %v533
        %v535 = vrot.slane %v534, 1
        %v536 = vadd.f32 %v534, %v535
        %v537 = vadd.f32 %v527, %v529
        %v538 = vrot.slane %v537, 4
        %v539 = vadd.f32 %v537, %v538
        %v540 = vrot.slane %v539, 2
        %v541 = vadd.f32 %v539, %v540
        %v542 = vrot.slane %v541, 1
        %v543 = vadd.f32 %v541, %v542
        %v544 = vmul.f32 %v504, %v396
        %v545 = vmul.f32 %v506, %v397
        %v546 = vmul.f32 %v510, %v398
        %v547 = vmul.f32 %v512, %v399
        %v548 = vadd.f32 %v544, %v546
        %v549 = vrot.slane %v548, 4
        %v550 = vadd.f32 %v548, %v549
        %v551 = vrot.slane %v550, 2
        %v552 = vadd.f32 %v550, %v551
        %v553 = vrot.slane %v552, 1
        %v554 = vadd.f32 %v552, %v553
        %v555 = vadd.f32 %v545, %v547
        %v556 = vrot.slane %v555, 4
        %v557 = vadd.f32 %v555, %v556
        %v558 = vrot.slane %v557, 2
        %v559 = vadd.f32 %v557, %v558
        %v560 = vrot.slane %v559, 1
        %v561 = vadd.f32 %v559, %v560
        %v562 = vmul.f32 %v516, %v396
        %v563 = vmul.f32 %v518, %v397
        %v564 = vmul.f32 %v522, %v398
        %v565 = vmul.f32 %v524, %v399
        %v566 = vadd.f32 %v562, %v564
        %v567 = vrot.slane %v566, 4
        %v568 = vadd.f32 %v566, %v567
        %v569 = vrot.slane %v568, 2
        %v570 = vadd.f32 %v568, %v569
        %v571 = vrot.slane %v570, 1
        %v572 = vadd.f32 %v570, %v571
        %v573 = vadd.f32 %v563, %v565
        %v574 = vrot.slane %v573, 4
        %v575 = vadd.f32 %v573, %v574
        %v576 = vrot.slane %v575, 2
        %v577 = vadd.f32 %v575, %v576
        %v578 = vrot.slane %v577, 1
        %v579 = vadd.f32 %v577, %v578
        %vm580 = vcmask 1040384
        %v581 = vsel %vm580, %v536, %v554
        %v582 = vsel %vm580, %v543, %v561
        %vm583 = vcmask 1041408
        %v584 = vsel %vm583, %v581, %v572
        %v585 = vsel %vm583, %v582, %v579
        %v588 = vcombine.low %v584, %v585
        %590 = vst [vmem:[%s241] sm:$0x77] %v588
        %s591 = smul.u32 2, %s23
        %p592 = scmp.lt.s32.totalorder %s22, 1
        %s593 = scalar_select %p592, %s22, 1
        %p594 = scmp.lt.s32.totalorder %s591, 1
        %s595 = scalar_select %p594, %s591, 1
        %s596 = smul.addr %s593, 2
        %s597 = sadd.s32 %s595, %s596
        %s598 = smul.addr %s597, 4
        %s599 = scalar_lea.vmem %s2, %s598
        %s600 = sand.u32 %s122, 1
        %s601 = scalar_lea.sflag [#allocation3], %s600
        %s602 = sand.u32 %s122, 1
        %s603 = smul.addr %s602, 2
        %s604 = scalar_lea.vmem [#allocation2], %s603
        // Predicated region
        $region29: #{tpu_custom_call.1} parent=27 // pred_check
          %p605 = pneg %p104
        $region30: #{tpu_custom_call.1} parent=27 // pred_check_branch
          %607 = sbr.rel (%p605) target = $region32
        $region31: #{tpu_custom_call.1} parent=27 // pred_region
          %s608 = smul.u32 2, %s23
        $region32: #{tpu_custom_call.1} parent=27 // pred_fallthru
          _
        // Predicated region
        $region33: #{tpu_custom_call.1} parent=27 // pred_check
          %p609 = pneg %p132
        $region34: #{tpu_custom_call.1} parent=27 // pred_check_branch
          %611 = sbr.rel (%p609) target = $region36
        $region35: #{tpu_custom_call.1} parent=27 // pred_region
          %s612 = smul.u32 2, %s23
          %s614 = ssub.s32 32, 32
          %615 = vsyncadd %s601, %s614
          %s616 = smul.addr %s22, 2
          %s617 = sadd.s32 %s612, %s616
          %s618 = smul.addr %s617, 16
          %s619 = scalar_lea.hbm %s3, %s618
          %s621 = sshll.u32 %s604, 4
          %s622 = int_to_ptr.vmem [resolvable:$true] %s621
          %624 = dma.vmem_to_hbm [thread:$0]  %s622, 32, %s619, %s601
        $region36: #{tpu_custom_call.1} parent=27 // pred_fallthru
          _
      $region28: #{tpu_custom_call.1} parent=5 // pred_fallthru
        _
      %p625 = scmp.le.s32.totalorder 2, %s13
      // Predicated region
      $region37: #{tpu_custom_call.1} parent=5 // pred_check
        %p626 = pneg %p625
      $region38: #{tpu_custom_call.1} parent=5 // pred_check_branch
        %628 = sbr.rel (%p626) target = $region40
      $region39: #{tpu_custom_call.1} parent=5 // pred_region
        %s629 = ssub.s32 %s13, 2
        // Predicated region
        $region41: #{tpu_custom_call.1} parent=39 // pred_check
          %p630 = pneg %p110
        $region42: #{tpu_custom_call.1} parent=39 // pred_check_branch
          %632 = sbr.rel (%p630) target = $region44
        $region43: #{tpu_custom_call.1} parent=39 // pred_region
          %s633 = smul.u32 2, %s25
          %p634 = scmp.lt.s32.totalorder %s24, 1
          %s635 = scalar_select %p634, %s24, 1
          %p636 = scmp.lt.s32.totalorder %s633, 1
          %s637 = scalar_select %p636, %s633, 1
          %s638 = smul.addr %s635, 2
          %s639 = sadd.s32 %s637, %s638
          %s640 = smul.addr %s639, 4
          %s641 = scalar_lea.vmem %s2, %s640
        $region44: #{tpu_custom_call.1} parent=39 // pred_fallthru
          _
        // Predicated region
        $region45: #{tpu_custom_call.1} parent=39 // pred_check
          %p642 = pneg %p138
        $region46: #{tpu_custom_call.1} parent=39 // pred_check_branch
          %644 = sbr.rel (%p642) target = $region48
        $region47: #{tpu_custom_call.1} parent=39 // pred_region
          %s645 = sand.u32 %s123, 1
          %s646 = scalar_lea.sflag [#allocation3], %s645
          %s647 = sand.u32 %s123, 1
          %s648 = smul.addr %s647, 2
          %s649 = scalar_lea.vmem [#allocation2], %s648
          %650 = dma.done %s646, 32
        $region48: #{tpu_custom_call.1} parent=39 // pred_fallthru
          _
      $region40: #{tpu_custom_call.1} parent=5 // pred_fallthru
        _
    $region6: #{tpu_custom_call.1} parent=1 // loop_footer
      %s17 = sadd.s32 1, %s13
    $region7: #{tpu_custom_call.1} parent=1 // loop_footer_branch
      %12 = sbr.rel target = $region3
    $region8: #{tpu_custom_call.1} parent=1 // loop_exit
      _
    %651 = vsyncpa [#allocation3], 1
    %s652 = scalar_lea.sflag [#allocation3], 1
    %653 = vsyncpa %s652, 1

</llo_original>
